<compile_context>
chip_gen: v6e
topology: v6e:2x2x1
jax: 0.10.0
libtpu: 0.0.40
codegen_flags: <defaults>
</compile_context>

<pallas_src>
import functools

import jax
import jax.numpy as jnp
from jax import lax
from jax.experimental import pallas as pl
from jax.experimental.pallas import tpu as pltpu

_BN_EPS = 1e-5
_LANE = 128
_DEFAULT_BLOCK_B = 256   # batch tile for the gridded path (128-aligned, VMEM-safe)


def _fine_net_kernel(x_ref, w0_ref, b0_ref, w1_ref, b1_ref, mean_ref, var_ref,
                     bottle_ref, logits_ref, bn_ref):
    """Fused Linear->ReLU->(Dropout=id)->{Linear, BatchNorm(eval)} on one tile."""
    x = x_ref[...]

    # Bottleneck: MXU matmul with f32 accumulation + broadcasted bias + ReLU.
    h = jnp.dot(x, w0_ref[...], preferred_element_type=jnp.float32) + b0_ref[...]
    h = jnp.maximum(h, 0.0)
    # TODO(synk): nn.Dropout(0.5) training-mode stochastic mask not implemented
    # (inference identity); could use pltpu.prng_seed/prng_random_bits if needed.
    bottle_ref[...] = h.astype(bottle_ref.dtype)

    # Classifier head on the lane-padded [H, C_pad] weight -> unmasked lane-dense store.
    logits = jnp.dot(h, w1_ref[...], preferred_element_type=jnp.float32) + b1_ref[...]
    logits_ref[...] = logits.astype(logits_ref.dtype)

    # BatchNorm1d(256, affine=False), eval semantics with running stats.
    # rsqrt lowers to the EUP slot -> essentially free next to the matmuls.
    inv = lax.rsqrt(var_ref[...] + _BN_EPS)
    bn_ref[...] = ((h - mean_ref[...]) * inv).astype(bn_ref.dtype)


def make_params(key, feature_len, hidden, cate_num, dtype=jnp.float32):
    """Mirror fine_net.__init__ and pre-bake the kernel layout (done ONCE)."""
    k0, k1 = jax.random.split(key)
    # PyTorch-layout parameters (as in the module).
    w0_pt = 0.005 * jax.random.normal(k0, (hidden, feature_len), dtype=dtype)  # [256, F]
    b0 = jnp.full((hidden,), 0.1, dtype=dtype)
    w1_pt = 0.01 * jax.random.normal(k1, (cate_num, hidden), dtype=dtype)      # [C, 256]
    b1 = jnp.zeros((cate_num,), dtype=dtype)
    running_mean = jnp.zeros((hidden,), dtype=dtype)
    running_var = jnp.ones((hidden,), dtype=dtype)

    c_pad = max(_LANE, ((cate_num + _LANE - 1) // _LANE) * _LANE)
    kernel_params = dict(
        w0_t=jnp.asarray(w0_pt.T),                                           # [F, 256]
        b0=b0.reshape(1, hidden),                                            # [1, 256]
        w1_t=jnp.zeros((hidden, c_pad), dtype).at[:, :cate_num].set(w1_pt.T),  # [256, 128]
        b1=jnp.zeros((1, c_pad), dtype).at[:, :cate_num].set(b1),            # [1, 128]
        running_mean=running_mean.reshape(1, hidden),
        running_var=running_var.reshape(1, hidden),
    )
    pt_params = dict(w0=w0_pt, b0=b0, w1=w1_pt, b1=b1)
    return kernel_params, pt_params


@functools.partial(jax.jit, static_argnames=("cate_num", "block_b"))
def fine_net_forward(features, w0_t, b0, w1_t, b1, running_mean, running_var,
                     *, cate_num, block_b=_DEFAULT_BLOCK_B):
    """features: [B, F] f32. Returns (bottleneck [B,256], logits [B,C], bn [B,256])."""
    B, F = features.shape
    H = w0_t.shape[1]
    c_pad = w1_t.shape[1]
    dtype = features.dtype

    cost = pl.CostEstimate(
        flops=2 * B * F * H + 2 * B * H * c_pad + 4 * B * H,
        transcendentals=H,
        bytes_accessed=4 * (B * F + F * H + H + H * c_pad + c_pad
                            + 2 * H + 2 * B * H + B * c_pad),
    )
    args = (features, w0_t, b0, w1_t, b1, running_mean, running_var)

    if B <= block_b:
        # Small batch: no grid (avoid degenerate-grid per-step bookkeeping),
        # everything whole-array resident in VMEM for one fused invocation.
        vmem = pl.BlockSpec(memory_space=pltpu.MemorySpace.VMEM)
        bottleneck, logits_pad, bn = pl.pallas_call(
            _fine_net_kernel,
            out_shape=(jax.ShapeDtypeStruct((B, H), dtype),
                       jax.ShapeDtypeStruct((B, c_pad), dtype),
                       jax.ShapeDtypeStruct((B, H), dtype)),
            in_specs=[vmem] * 7,
            out_specs=(vmem, vmem, vmem),
            cost_estimate=cost,
        )(*args)
        return bottleneck, logits_pad[:, :cate_num], bn

    # Large batch: tile only B; weights/bias/BN stats stay resident, activation
    # stream is double-buffered, and the batch axis is "parallel" (megacore).
    num_tiles = pl.cdiv(B, block_b)
    b_pad = num_tiles * block_b
    x = features if b_pad == B else jnp.pad(features, ((0, b_pad - B), (0, 0)))
    bottleneck, logits_pad, bn = pl.pallas_call(
        _fine_net_kernel,
        out_shape=(jax.ShapeDtypeStruct((b_pad, H), dtype),
                   jax.ShapeDtypeStruct((b_pad, c_pad), dtype),
                   jax.ShapeDtypeStruct((b_pad, H), dtype)),
        grid=(num_tiles,),
        in_specs=[
            pl.BlockSpec((block_b, F), lambda i: (i, 0)),
            pl.BlockSpec((F, H), lambda i: (0, 0)),
            pl.BlockSpec((1, H), lambda i: (0, 0)),
            pl.BlockSpec((H, c_pad), lambda i: (0, 0)),
            pl.BlockSpec((1, c_pad), lambda i: (0, 0)),
            pl.BlockSpec((1, H), lambda i: (0, 0)),
            pl.BlockSpec((1, H), lambda i: (0, 0)),
        ],
        out_specs=(
            pl.BlockSpec((block_b, H), lambda i: (i, 0)),
            pl.BlockSpec((block_b, c_pad), lambda i: (i, 0)),
            pl.BlockSpec((block_b, H), lambda i: (i, 0)),
        ),
        compiler_params=pltpu.CompilerParams(dimension_semantics=("parallel",)),
        cost_estimate=cost,
    )(x, *args[1:])
    return bottleneck[:B], logits_pad[:B, :cate_num], bn[:B]


if __name__ == "__main__":
    feature_len, hidden, cate_num = 32, 256, 16
    B = 8

    key = jax.random.PRNGKey(0)
    k_param, k_x, k_x2 = jax.random.split(key, 3)
    kp, pt = make_params(k_param, feature_len, hidden, cate_num)

    features = jax.random.normal(k_x, (B, feature_len), dtype=jnp.float32)

    bottleneck, logits, bn = fine_net_forward(
        features, kp["w0_t"], kp["b0"], kp["w1_t"], kp["b1"],
        kp["running_mean"], kp["running_var"], cate_num=cate_num)
    jax.block_until_ready((bottleneck, logits, bn))

    # Pure-JAX reference (eval-mode fine_net forward, PyTorch parameter layout).
    def ref_forward(x):
        h = jnp.maximum(
            jnp.dot(x, pt["w0"].T, precision=lax.Precision.HIGHEST) + pt["b0"], 0.0)
        lg = jnp.dot(h, pt["w1"].T, precision=lax.Precision.HIGHEST) + pt["b1"]
        bn_ref = h * lax.rsqrt(jnp.float32(1.0) + _BN_EPS)   # mean=0, var=1 running stats
        return h, lg, bn_ref

    h_ref, lg_ref, bn_ref = ref_forward(features)
    assert bottleneck.shape == (B, hidden)
    assert logits.shape == (B, cate_num)
    assert bn.shape == (B, hidden)
    assert jnp.allclose(bottleneck, h_ref, atol=2e-5, rtol=2e-5)
    assert jnp.allclose(logits, lg_ref, atol=2e-5, rtol=2e-5)
    assert jnp.allclose(bn, bn_ref, atol=2e-5, rtol=2e-5)

    # Also exercise the batch-tiled (gridded, parallel) path at a small size.
    B2 = 20
    features2 = jax.random.normal(k_x2, (B2, feature_len), dtype=jnp.float32)
    b2, l2, n2 = fine_net_forward(
        features2, kp["w0_t"], kp["b0"], kp["w1_t"], kp["b1"],
        kp["running_mean"], kp["running_var"], cate_num=cate_num, block_b=8)
    jax.block_until_ready((b2, l2, n2))
    h2, lg2, bn2 = ref_forward(features2)
    assert jnp.allclose(b2, h2, atol=2e-5, rtol=2e-5)
    assert jnp.allclose(l2, lg2, atol=2e-5, rtol=2e-5)
    assert jnp.allclose(n2, bn2, atol=2e-5, rtol=2e-5)

    print("KERNEL_OK")
</pallas_src>

<mosaic_0001>
module attributes {stable_mosaic.version = 11 : i64} {
  func.func @_fine_net_kernel(%arg0: memref<8x32xf32, #tpu.memory_space<vmem>>, %arg1: memref<32x256xf32, #tpu.memory_space<vmem>>, %arg2: memref<1x256xf32, #tpu.memory_space<vmem>>, %arg3: memref<256x128xf32, #tpu.memory_space<vmem>>, %arg4: memref<1x128xf32, #tpu.memory_space<vmem>>, %arg5: memref<1x256xf32, #tpu.memory_space<vmem>>, %arg6: memref<1x256xf32, #tpu.memory_space<vmem>>, %arg7: memref<8x256xf32, #tpu.memory_space<vmem>>, %arg8: memref<8x128xf32, #tpu.memory_space<vmem>>, %arg9: memref<8x256xf32, #tpu.memory_space<vmem>>) attributes {dimension_semantics = [], scalar_prefetch = 0 : i64, scratch_operands = 0 : i64, tpu.core_type = #tpu.core_type<tc>} {
    %c0 = arith.constant 0 : index
    %c0_0 = arith.constant 0 : index
    %0 = vector.load %arg0[%c0, %c0_0] : memref<8x32xf32, #tpu.memory_space<vmem>>, vector<8x32xf32>
    %c0_1 = arith.constant 0 : index
    %c0_2 = arith.constant 0 : index
    %1 = vector.load %arg1[%c0_1, %c0_2] : memref<32x256xf32, #tpu.memory_space<vmem>>, vector<32x256xf32>
    %cst = arith.constant dense<0.000000e+00> : vector<8x256xf32>
    %2 = tpu.matmul %0, %1, %cst {dimension_numbers = #tpu.dot_dimension_numbers<[1], [0], [0], [1], [0, 0, 1, 1], [], []>} : vector<8x32xf32>, vector<32x256xf32>, vector<8x256xf32> -> vector<8x256xf32>
    %c0_3 = arith.constant 0 : index
    %c0_4 = arith.constant 0 : index
    %3 = vector.load %arg2[%c0_3, %c0_4] : memref<1x256xf32, #tpu.memory_space<vmem>>, vector<1x256xf32>
    %4 = vector.broadcast %3 : vector<1x256xf32> to vector<8x256xf32>
    %5 = arith.addf %2, %4 : vector<8x256xf32>
    %cst_5 = arith.constant 0.000000e+00 : f32
    %6 = vector.broadcast %cst_5 : f32 to vector<8x256xf32>
    %7 = arith.maximumf %5, %6 : vector<8x256xf32>
    %c0_6 = arith.constant 0 : index
    %c0_7 = arith.constant 0 : index
    %8 = vector.load %arg7[%c0_6, %c0_7] : memref<8x256xf32, #tpu.memory_space<vmem>>, vector<8x256xf32>
    tpu.vector_store %arg7[%c0_6, %c0_7], %7 {strides = array<i32>} : memref<8x256xf32, #tpu.memory_space<vmem>>, vector<8x256xf32>,
    %c0_8 = arith.constant 0 : index
    %c0_9 = arith.constant 0 : index
    %9 = vector.load %arg3[%c0_8, %c0_9] : memref<256x128xf32, #tpu.memory_space<vmem>>, vector<256x128xf32>
    %cst_10 = arith.constant dense<0.000000e+00> : vector<8x128xf32>
    %10 = tpu.matmul %7, %9, %cst_10 {dimension_numbers = #tpu.dot_dimension_numbers<[1], [0], [0], [1], [0, 0, 1, 1], [], []>} : vector<8x256xf32>, vector<256x128xf32>, vector<8x128xf32> -> vector<8x128xf32>
    %c0_11 = arith.constant 0 : index
    %c0_12 = arith.constant 0 : index
    %11 = vector.load %arg4[%c0_11, %c0_12] : memref<1x128xf32, #tpu.memory_space<vmem>>, vector<1x128xf32>
    %12 = vector.broadcast %11 : vector<1x128xf32> to vector<8x128xf32>
    %13 = arith.addf %10, %12 : vector<8x128xf32>
    %c0_13 = arith.constant 0 : index
    %c0_14 = arith.constant 0 : index
    %14 = vector.load %arg8[%c0_13, %c0_14] : memref<8x128xf32, #tpu.memory_space<vmem>>, vector<8x128xf32>
    tpu.vector_store %arg8[%c0_13, %c0_14], %13 {strides = array<i32>} : memref<8x128xf32, #tpu.memory_space<vmem>>, vector<8x128xf32>,
    %c0_15 = arith.constant 0 : index
    %c0_16 = arith.constant 0 : index
    %15 = vector.load %arg6[%c0_15, %c0_16] : memref<1x256xf32, #tpu.memory_space<vmem>>, vector<1x256xf32>
    %cst_17 = arith.constant 9.99999974E-6 : f32
    %16 = vector.broadcast %cst_17 : f32 to vector<1x256xf32>
    %17 = arith.addf %15, %16 : vector<1x256xf32>
    %18 = math.rsqrt %17 : vector<1x256xf32>
    %c0_18 = arith.constant 0 : index
    %c0_19 = arith.constant 0 : index
    %19 = vector.load %arg5[%c0_18, %c0_19] : memref<1x256xf32, #tpu.memory_space<vmem>>, vector<1x256xf32>
    %20 = vector.broadcast %19 : vector<1x256xf32> to vector<8x256xf32>
    %21 = arith.subf %7, %20 : vector<8x256xf32>
    %22 = vector.broadcast %18 : vector<1x256xf32> to vector<8x256xf32>
    %23 = arith.mulf %21, %22 : vector<8x256xf32>
    %c0_20 = arith.constant 0 : index
    %c0_21 = arith.constant 0 : index
    %24 = vector.load %arg9[%c0_20, %c0_21] : memref<8x256xf32, #tpu.memory_space<vmem>>, vector<8x256xf32>
    tpu.vector_store %arg9[%c0_20, %c0_21], %23 {strides = array<i32>} : memref<8x256xf32, #tpu.memory_space<vmem>>, vector<8x256xf32>,
    return
  }
}

</mosaic_0001>

<llo_original>
// kernel: fine_net_forward.1
$region0: #{fine_net_forward.1}
  #allocation0 [shape = 'u32[]', space=smem, size = 0x4, offset = 0x4, fixed_abs, tag = 'smem constant byte address 0x4 - core index']
  #allocation1 [shape = 'u32[144,128]{1,0:T(1,128)}', space=vmem, size = 0x12000, scoped, tag = 'internal scratch']
  %s0 = inlined_call_operand.hbm [shape: f32[8,32], index: 0, kind: input, shape index: {}]
  %s1 = inlined_call_operand.hbm [shape: f32[32,256], index: 1, kind: input, shape index: {}]
  %s2 = inlined_call_operand.vmem [shape: f32[1,256], index: 2, kind: input, shape index: {}]
  %s3 = inlined_call_operand.hbm [shape: f32[256,128], index: 3, kind: input, shape index: {}]
  %s4 = inlined_call_operand.vmem [shape: f32[1,128], index: 4, kind: input, shape index: {}]
  %s5 = inlined_call_operand.vmem [shape: f32[1,256], index: 5, kind: input, shape index: {}]
  %s6 = inlined_call_operand.vmem [shape: f32[1,256], index: 6, kind: input, shape index: {}]
  %s7 = inlined_call_operand.hbm [shape: f32[8,256], index: 7, kind: output, shape index: {0}]
  %s8 = inlined_call_operand.hbm [shape: f32[8,128], index: 8, kind: output, shape index: {1}]
  %s9 = inlined_call_operand.hbm [shape: f32[8,256], index: 9, kind: output, shape index: {2}]
  %10 = xla_tuple %s7, %s8, %s9
  %s11 = sld [smem:[#allocation0]]
  $region66: #{fine_net_forward.1} parent=0
    _
  %s13 = ssub.s32 1, %s11
  %s14 = scalar_select 0, %s13, %s11
  $region1: #{fine_net_forward.1} parent=0
    #allocation2 [shape = 'u8[4096]{0}', space=vmem, size = 0x1000, scoped, tag = 'input window, operand 0, single buffered']
    #allocation3 [shape = 's32[1]{0}', space=sflag, size = 0x4, scoped, tag = 'scoped memory for fine_net_forward.1']
    #allocation4 [shape = 's32[1]{0}', space=sflag, size = 0x4, scoped, tag = 'scoped memory for fine_net_forward.1']
    #allocation5 [shape = 'u8[32768]{0}', space=vmem, size = 0x8000, scoped, tag = 'input window, operand 1, single buffered']
    #allocation6 [shape = 's32[1]{0}', space=sflag, size = 0x4, scoped, tag = 'scoped memory for fine_net_forward.1']
    #allocation7 [shape = 'u8[131072]{0}', space=vmem, size = 0x20000, scoped, tag = 'input window, operand 3, single buffered']
    #allocation8 [shape = 'u8[8192]{0}', space=vmem, size = 0x2000, scoped, tag = 'output window, operand 0, single buffered']
    #allocation9 [shape = 'u8[4096]{0}', space=vmem, size = 0x1000, scoped, tag = 'output window, operand 1, single buffered']
    #allocation10 [shape = 's32[1]{0}', space=sflag, size = 0x4, scoped, tag = 'scoped memory for fine_net_forward.1']
    #allocation11 [shape = 'u8[8192]{0}', space=vmem, size = 0x2000, scoped, tag = 'output window, operand 2, single buffered']
    %15 = vsyncpa [#allocation3], 0
    %16 = vsyncpa [#allocation6], 0
    %17 = vsyncpa [#allocation4], 0
    %18 = vsyncpa [#allocation10], 0
    // Predicated region
    $region2: #{fine_net_forward.1} parent=1 // pred_check
      _
    $region3: #{fine_net_forward.1} parent=1 // pred_check_branch
      %20 = sbr.rel (0) target = $region5
    $region4: #{fine_net_forward.1} parent=1 // pred_region
      %s22 = ssub.s32 128, 128
      %23 = vsyncadd [#allocation3], %s22
      %s25 = sshll.u32 [#allocation2], 4
      %s26 = int_to_ptr.vmem [resolvable:$true] %s25
      %28 = dma.hbm_to_vmem [thread:$0]  %s0, 128, %s26, [#allocation3]
    $region5: #{fine_net_forward.1} parent=1 // pred_fallthru
      _
    // Predicated region
    $region6: #{fine_net_forward.1} parent=1 // pred_check
      _
    $region7: #{fine_net_forward.1} parent=1 // pred_check_branch
      %30 = sbr.rel (0) target = $region9
    $region8: #{fine_net_forward.1} parent=1 // pred_region
      %s32 = ssub.s32 1024, 1024
      %33 = vsyncadd [#allocation6], %s32
      %s34 = sshll.u32 [#allocation5], 4
      %s35 = int_to_ptr.vmem [resolvable:$true] %s34
      %40 = dma.hbm_to_vmem [thread:$0]  %s1, 1024, %s35, [#allocation6], 256, 256, 16
    $region9: #{fine_net_forward.1} parent=1 // pred_fallthru
      _
    // Predicated region
    $region10: #{fine_net_forward.1} parent=1 // pred_check
      _
    $region11: #{fine_net_forward.1} parent=1 // pred_check_branch
      %42 = sbr.rel (0) target = $region13
    $region12: #{fine_net_forward.1} parent=1 // pred_region
      _
    $region13: #{fine_net_forward.1} parent=1 // pred_fallthru
      _
    // Predicated region
    $region14: #{fine_net_forward.1} parent=1 // pred_check
      _
    $region15: #{fine_net_forward.1} parent=1 // pred_check_branch
      %44 = sbr.rel (0) target = $region17
    $region16: #{fine_net_forward.1} parent=1 // pred_region
      %s46 = ssub.s32 4096, 4096
      %47 = vsyncadd [#allocation6], %s46
      %s48 = sshll.u32 [#allocation7], 4
      %s49 = int_to_ptr.vmem [resolvable:$true] %s48
      %54 = dma.hbm_to_vmem [thread:$0]  %s3, 4096, %s49, [#allocation6], 128, 128, 8
    $region17: #{fine_net_forward.1} parent=1 // pred_fallthru
      _
    // Predicated region
    $region18: #{fine_net_forward.1} parent=1 // pred_check
      _
    $region19: #{fine_net_forward.1} parent=1 // pred_check_branch
      %56 = sbr.rel (0) target = $region21
    $region20: #{fine_net_forward.1} parent=1 // pred_region
      _
    $region21: #{fine_net_forward.1} parent=1 // pred_fallthru
      _
    // Predicated region
    $region22: #{fine_net_forward.1} parent=1 // pred_check
      _
    $region23: #{fine_net_forward.1} parent=1 // pred_check_branch
      %58 = sbr.rel (0) target = $region25
    $region24: #{fine_net_forward.1} parent=1 // pred_region
      _
    $region25: #{fine_net_forward.1} parent=1 // pred_fallthru
      _
    // Predicated region
    $region26: #{fine_net_forward.1} parent=1 // pred_check
      _
    $region27: #{fine_net_forward.1} parent=1 // pred_check_branch
      %60 = sbr.rel (0) target = $region29
    $region28: #{fine_net_forward.1} parent=1 // pred_region
      _
    $region29: #{fine_net_forward.1} parent=1 // pred_fallthru
      _
    // Predicated region
    $region30: #{fine_net_forward.1} parent=1 // pred_check
      _
    $region31: #{fine_net_forward.1} parent=1 // pred_check_branch
      %62 = sbr.rel (0) target = $region33
    $region32: #{fine_net_forward.1} parent=1 // pred_region
      %63 = dma.done [#allocation3], 128
    $region33: #{fine_net_forward.1} parent=1 // pred_fallthru
      _
    // Predicated region
    $region34: #{fine_net_forward.1} parent=1 // pred_check
      _
    $region35: #{fine_net_forward.1} parent=1 // pred_check_branch
      %65 = sbr.rel (0) target = $region37
    $region36: #{fine_net_forward.1} parent=1 // pred_region
      %66 = dma.done [#allocation6], 1024
    $region37: #{fine_net_forward.1} parent=1 // pred_fallthru
      _
    // Predicated region
    $region38: #{fine_net_forward.1} parent=1 // pred_check
      _
    $region39: #{fine_net_forward.1} parent=1 // pred_check_branch
      %68 = sbr.rel (0) target = $region41
    $region40: #{fine_net_forward.1} parent=1 // pred_region
      %69 = dma.done [#allocation6], 4096
    $region41: #{fine_net_forward.1} parent=1 // pred_fallthru
      _
    %v70 = vld [vmem:[#allocation2] sm:$0xff]
    %v71 = vld [vmem:[#allocation5] sm:$0xff]
    %v72 = vld [vmem:[#allocation5 + $0x8] sm:$0xff]
    %v73 = vld [vmem:[#allocation5 + $0x10] sm:$0xff]
    %v74 = vld [vmem:[#allocation5 + $0x18] sm:$0xff]
    %v75 = vld [vmem:[#allocation5 + $0x20] sm:$0xff]
    %v76 = vld [vmem:[#allocation5 + $0x28] sm:$0xff]
    %v77 = vld [vmem:[#allocation5 + $0x30] sm:$0xff]
    %v78 = vld [vmem:[#allocation5 + $0x38] sm:$0xff]
    %v79 = vld [vmem:[%s2] sm:$0x3]
    %v81 = vlaneseq
    %v82 = vshrl.u32 %v81, 7
    %v83 = vsub.s32 0, %v82
    %v84 = vrot.slane %v79, %v83
    %v85 = vlaneseq
    %v86 = vshrl.u32 %v85, 7
    %v87 = vsub.s32 1, %v86
    %v88 = vrot.slane %v79, %v87
    %vm91 = vcmask 261120
    %v93 = vsel %vm91, %v70, 0
    %95 = vmatprep.subr.mxu0 0.0
    %96 = vmatpush1.msra.mxu0 0.0
    %97 = vmatprep.subr.mxu0 0.0
    %98 = vmatpush1.msra.mxu0 0.0
    %99 = vmatprep.subr.mxu0 0.0
    %100 = vmatpush1.msra.mxu0 0.0
    %101 = vmatprep.subr.mxu0 0.0
    %102 = vmatpush1.msra.mxu0 0.0
    %103 = vmatprep.subr.mxu0 0.0
    %104 = vmatpush1.msra.mxu0 0.0
    %105 = vmatprep.subr.mxu0 0.0
    %106 = vmatpush1.msra.mxu0 0.0
    %107 = vmatprep.subr.mxu0 0.0
    %108 = vmatpush1.msra.mxu0 0.0
    %109 = vmatprep.subr.mxu0 0.0
    %110 = vmatpush1.msra.mxu0 0.0
    %111 = vmatprep.subr.mxu0 0.0
    %112 = vmatpush1.msra.mxu0 0.0
    %113 = vmatprep.subr.mxu0 0.0
    %114 = vmatpush1.msra.mxu0 0.0
    %115 = vmatprep.subr.mxu0 0.0
    %116 = vmatpush1.msra.mxu0 0.0
    %117 = vmatprep.subr.mxu0 0.0
    %118 = vmatpush1.msra.mxu0 0.0
    %119 = vmatprep.subr.mxu0 %v78
    %120 = vmatpush1.msra.mxu0 %v77
    %121 = vmatprep.subr.mxu0 %v76
    %122 = vmatpush1.msra.mxu0 %v75
    %123 = vmatprep.subr.mxu0 %v74
    %124 = vmatpush1.msra.mxu0 %v73
    %125 = vmatprep.subr.mxu0 %v72
    %126 = vmatpush1.msra.mxu0 %v71
    %127 = vmatprep.subr.mxu0 0.0
    %128 = vmatpush2.msra.mxu0 0.0
    %129 = vmatprep.subr.mxu0 0.0
    %130 = vmatpush2.msra.mxu0 0.0
    %131 = vmatprep.subr.mxu0 0.0
    %132 = vmatpush2.msra.mxu0 0.0
    %133 = vmatprep.subr.mxu0 0.0
    %134 = vmatpush2.msra.mxu0 0.0
    %135 = vmatprep.subr.mxu0 0.0
    %136 = vmatpush2.msra.mxu0 0.0
    %137 = vmatprep.subr.mxu0 0.0
    %138 = vmatpush2.msra.mxu0 0.0
    %139 = vmatprep.subr.mxu0 0.0
    %140 = vmatpush2.msra.mxu0 0.0
    %141 = vmatprep.subr.mxu0 0.0
    %142 = vmatpush2.msra.mxu0 0.0
    %143 = vmatprep.subr.mxu0 0.0
    %144 = vmatpush2.msra.mxu0 0.0
    %145 = vmatprep.subr.mxu0 0.0
    %146 = vmatpush2.msra.mxu0 0.0
    %147 = vmatprep.subr.mxu0 0.0
    %148 = vmatpush2.msra.mxu0 0.0
    %149 = vmatprep.subr.mxu0 0.0
    %150 = vmatpush2.msra.mxu0 0.0
    %151 = vmatprep.subr.mxu0 0.0
    %152 = vmatpush2.msra.mxu0 0.0
    %153 = vmatprep.subr.mxu0 0.0
    %154 = vmatpush2.msra.mxu0 0.0
    %155 = vmatprep.subr.mxu0 0.0
    %156 = vmatpush2.msra.mxu0 0.0
    %157 = vmatprep.subr.mxu0 0.0
    %158 = vmatpush2.msra.mxu0 0.0
    %159 = vmatprep.mubr.f32.mxu0 0.0
    %160 = vmatmul.mubr.f32.gmra.mxu0 %v93
    %v161 = vpop.f32.mrf.mxu0
    %v162 = vadd.f32 %v84, %v161
    %v163 = vpop.f32.mrf.mxu0
    %v164 = vadd.f32 %v88, %v163
    %165 = vdwg.mxu0
    %v166 = vmax.f32 %v162, 0.0
    %v167 = vmax.f32 %v164, 0.0
    %168 = vst [vmem:[#allocation8] sm:$0xff] %v166
    %169 = vst [vmem:[#allocation8 + $0x8] sm:$0xff] %v167
    %v170 = vld [vmem:[#allocation7] sm:$0xff]
    %v171 = vld [vmem:[#allocation7 + $0x8] sm:$0xff]
    %v172 = vld [vmem:[#allocation7 + $0x10] sm:$0xff]
    %v173 = vld [vmem:[#allocation7 + $0x18] sm:$0xff]
    %v174 = vld [vmem:[#allocation7 + $0x20] sm:$0xff]
    %v175 = vld [vmem:[#allocation7 + $0x28] sm:$0xff]
    %v176 = vld [vmem:[#allocation7 + $0x30] sm:$0xff]
    %v177 = vld [vmem:[#allocation7 + $0x38] sm:$0xff]
    %v178 = vld [vmem:[#allocation7 + $0x40] sm:$0xff]
    %v179 = vld [vmem:[#allocation7 + $0x48] sm:$0xff]
    %v180 = vld [vmem:[#allocation7 + $0x50] sm:$0xff]
    %v181 = vld [vmem:[#allocation7 + $0x58] sm:$0xff]
    %v182 = vld [vmem:[#allocation7 + $0x60] sm:$0xff]
    %v183 = vld [vmem:[#allocation7 + $0x68] sm:$0xff]
    %v184 = vld [vmem:[#allocation7 + $0x70] sm:$0xff]
    %v185 = vld [vmem:[#allocation7 + $0x78] sm:$0xff]
    %v186 = vld [vmem:[#allocation7 + $0x80] sm:$0xff]
    %v187 = vld [vmem:[#allocation7 + $0x88] sm:$0xff]
    %v188 = vld [vmem:[#allocation7 + $0x90] sm:$0xff]
    %v189 = vld [vmem:[#allocation7 + $0x98] sm:$0xff]
    %v190 = vld [vmem:[#allocation7 + $0xa0] sm:$0xff]
    %v191 = vld [vmem:[#allocation7 + $0xa8] sm:$0xff]
    %v192 = vld [vmem:[#allocation7 + $0xb0] sm:$0xff]
    %v193 = vld [vmem:[#allocation7 + $0xb8] sm:$0xff]
    %v194 = vld [vmem:[#allocation7 + $0xc0] sm:$0xff]
    %v195 = vld [vmem:[#allocation7 + $0xc8] sm:$0xff]
    %v196 = vld [vmem:[#allocation7 + $0xd0] sm:$0xff]
    %v197 = vld [vmem:[#allocation7 + $0xd8] sm:$0xff]
    %v198 = vld [vmem:[#allocation7 + $0xe0] sm:$0xff]
    %v199 = vld [vmem:[#allocation7 + $0xe8] sm:$0xff]
    %v200 = vld [vmem:[#allocation7 + $0xf0] sm:$0xff]
    %v201 = vld [vmem:[#allocation7 + $0xf8] sm:$0xff]
    %v202 = vld [vmem:[%s4] sm:$0x1]
    %v204 = vlaneseq
    %v205 = vshrl.u32 %v204, 7
    %v206 = vsub.s32 0, %v205
    %v207 = vrot.slane %v202, %v206
    %209 = vmatprep.subr.mxu0 0.0
    %210 = vmatpush1.msra.mxu0 %v185
    %211 = vmatprep.subr.mxu0 0.0
    %212 = vmatpush1.msra.mxu0 %v184
    %213 = vmatprep.subr.mxu0 0.0
    %214 = vmatpush1.msra.mxu0 %v183
    %215 = vmatprep.subr.mxu0 0.0
    %216 = vmatpush1.msra.mxu0 %v182
    %217 = vmatprep.subr.mxu0 0.0
    %218 = vmatpush1.msra.mxu0 %v181
    %219 = vmatprep.subr.mxu0 0.0
    %220 = vmatpush1.msra.mxu0 %v180
    %221 = vmatprep.subr.mxu0 0.0
    %222 = vmatpush1.msra.mxu0 %v179
    %223 = vmatprep.subr.mxu0 0.0
    %224 = vmatpush1.msra.mxu0 %v178
    %225 = vmatprep.subr.mxu0 0.0
    %226 = vmatpush1.msra.mxu0 %v177
    %227 = vmatprep.subr.mxu0 0.0
    %228 = vmatpush1.msra.mxu0 %v176
    %229 = vmatprep.subr.mxu0 0.0
    %230 = vmatpush1.msra.mxu0 %v175
    %231 = vmatprep.subr.mxu0 0.0
    %232 = vmatpush1.msra.mxu0 %v174
    %233 = vmatprep.subr.mxu0 0.0
    %234 = vmatpush1.msra.mxu0 %v173
    %235 = vmatprep.subr.mxu0 0.0
    %236 = vmatpush1.msra.mxu0 %v172
    %237 = vmatprep.subr.mxu0 0.0
    %238 = vmatpush1.msra.mxu0 %v171
    %239 = vmatprep.subr.mxu0 0.0
    %240 = vmatpush1.msra.mxu0 %v170
    %241 = vmatprep.subr.mxu0 0.0
    %242 = vmatpush2.msra.mxu0 %v201
    %243 = vmatprep.subr.mxu0 0.0
    %244 = vmatpush2.msra.mxu0 %v200
    %245 = vmatprep.subr.mxu0 0.0
    %246 = vmatpush2.msra.mxu0 %v199
    %247 = vmatprep.subr.mxu0 0.0
    %248 = vmatpush2.msra.mxu0 %v198
    %249 = vmatprep.subr.mxu0 0.0
    %250 = vmatpush2.msra.mxu0 %v197
    %251 = vmatprep.subr.mxu0 0.0
    %252 = vmatpush2.msra.mxu0 %v196
    %253 = vmatprep.subr.mxu0 0.0
    %254 = vmatpush2.msra.mxu0 %v195
    %255 = vmatprep.subr.mxu0 0.0
    %256 = vmatpush2.msra.mxu0 %v194
    %257 = vmatprep.subr.mxu0 0.0
    %258 = vmatpush2.msra.mxu0 %v193
    %259 = vmatprep.subr.mxu0 0.0
    %260 = vmatpush2.msra.mxu0 %v192
    %261 = vmatprep.subr.mxu0 0.0
    %262 = vmatpush2.msra.mxu0 %v191
    %263 = vmatprep.subr.mxu0 0.0
    %264 = vmatpush2.msra.mxu0 %v190
    %265 = vmatprep.subr.mxu0 0.0
    %266 = vmatpush2.msra.mxu0 %v189
    %267 = vmatprep.subr.mxu0 0.0
    %268 = vmatpush2.msra.mxu0 %v188
    %269 = vmatprep.subr.mxu0 0.0
    %270 = vmatpush2.msra.mxu0 %v187
    %271 = vmatprep.subr.mxu0 0.0
    %272 = vmatpush2.msra.mxu0 %v186
    %273 = vmatprep.mubr.f32.mxu0 %v167
    %274 = vmatmul.mubr.f32.gmra.mxu0 %v166
    %v275 = vpop.f32.mrf.mxu0
    %v276 = vadd.f32 %v207, %v275
    %v277 = vpop.f32.mrf.mxu0
    %278 = vdwg.mxu0
    %279 = vst [vmem:[#allocation9] sm:$0xff] %v276
    %v280 = vld [vmem:[%s6] sm:$0x3]
    %v281 = vadd.f32 %v280, 1e-05
    %v282 = vrsqrt.pop %v281
    %v283 = vld [vmem:[%s5] sm:$0x3]
    %v285 = vlaneseq
    %v286 = vshrl.u32 %v285, 7
    %v287 = vsub.s32 0, %v286
    %v288 = vrot.slane %v283, %v287
    %v289 = vlaneseq
    %v290 = vshrl.u32 %v289, 7
    %v291 = vsub.s32 1, %v290
    %v292 = vrot.slane %v283, %v291
    %v295 = vsub.f32 %v166, %v288
    %v296 = vsub.f32 %v167, %v292
    %v298 = vlaneseq
    %v299 = vshrl.u32 %v298, 7
    %v300 = vsub.s32 0, %v299
    %v301 = vrot.slane %v282, %v300
    %v302 = vlaneseq
    %v303 = vshrl.u32 %v302, 7
    %v304 = vsub.s32 1, %v303
    %v305 = vrot.slane %v282, %v304
    %v308 = vmul.f32 %v295, %v301
    %v309 = vmul.f32 %v296, %v305
    %310 = vst [vmem:[#allocation11] sm:$0xff] %v308
    %311 = vst [vmem:[#allocation11 + $0x8] sm:$0xff] %v309
    // Predicated region
    $region42: #{fine_net_forward.1} parent=1 // pred_check
      _
    $region43: #{fine_net_forward.1} parent=1 // pred_check_branch
      %313 = sbr.rel (0) target = $region45
    $region44: #{fine_net_forward.1} parent=1 // pred_region
      %s315 = ssub.s32 256, 256
      %316 = vsyncadd [#allocation4], %s315
      %s318 = sshll.u32 [#allocation8], 4
      %s319 = int_to_ptr.vmem [resolvable:$true] %s318
      %321 = dma.vmem_to_hbm [thread:$0]  %s319, 256, %s7, [#allocation4]
    $region45: #{fine_net_forward.1} parent=1 // pred_fallthru
      _
    // Predicated region
    $region46: #{fine_net_forward.1} parent=1 // pred_check
      _
    $region47: #{fine_net_forward.1} parent=1 // pred_check_branch
      %323 = sbr.rel (0) target = $region49
    $region48: #{fine_net_forward.1} parent=1 // pred_region
      %s325 = ssub.s32 128, 128
      %326 = vsyncadd [#allocation10], %s325
      %s328 = sshll.u32 [#allocation9], 4
      %s329 = int_to_ptr.vmem [resolvable:$true] %s328
      %331 = dma.vmem_to_hbm [thread:$0]  %s329, 128, %s8, [#allocation10]
    $region49: #{fine_net_forward.1} parent=1 // pred_fallthru
      _
    // Predicated region
    $region50: #{fine_net_forward.1} parent=1 // pred_check
      _
    $region51: #{fine_net_forward.1} parent=1 // pred_check_branch
      %333 = sbr.rel (0) target = $region53
    $region52: #{fine_net_forward.1} parent=1 // pred_region
      %s335 = ssub.s32 256, 256
      %336 = vsyncadd [#allocation10], %s335
      %s338 = sshll.u32 [#allocation11], 4
      %s339 = int_to_ptr.vmem [resolvable:$true] %s338
      %341 = dma.vmem_to_hbm [thread:$0]  %s339, 256, %s9, [#allocation10]
    $region53: #{fine_net_forward.1} parent=1 // pred_fallthru
      _
    // Predicated region
    $region54: #{fine_net_forward.1} parent=1 // pred_check
      _
    $region55: #{fine_net_forward.1} parent=1 // pred_check_branch
      %343 = sbr.rel (0) target = $region57
    $region56: #{fine_net_forward.1} parent=1 // pred_region
      %344 = dma.done [#allocation4], 256
    $region57: #{fine_net_forward.1} parent=1 // pred_fallthru
      _
    // Predicated region
    $region58: #{fine_net_forward.1} parent=1 // pred_check
      _
    $region59: #{fine_net_forward.1} parent=1 // pred_check_branch
      %346 = sbr.rel (0) target = $region61
    $region60: #{fine_net_forward.1} parent=1 // pred_region
      %347 = dma.done [#allocation10], 128
    $region61: #{fine_net_forward.1} parent=1 // pred_fallthru
      _
    // Predicated region
    $region62: #{fine_net_forward.1} parent=1 // pred_check
      _
    $region63: #{fine_net_forward.1} parent=1 // pred_check_branch
      %349 = sbr.rel (0) target = $region65
    $region64: #{fine_net_forward.1} parent=1 // pred_region
      %350 = dma.done [#allocation10], 256
    $region65: #{fine_net_forward.1} parent=1 // pred_fallthru
      _
    %351 = vsyncpa [#allocation3], 1
    %352 = vsyncpa [#allocation6], 1
    %353 = vsyncpa [#allocation4], 1
    %354 = vsyncpa [#allocation10], 1

</llo_original>
